<compile_context>
chip_gen: v7x
topology: tpu7x:2x2x1
jax: 0.10.0
libtpu: 0.0.40
codegen_flags: <defaults>
</compile_context>

<pallas_src>
import functools

import jax
import jax.numpy as jnp
from jax.experimental import pallas as pl
from jax.experimental.pallas import tpu as pltpu

ALPHA = 0.5
BETA = 0.5

_LANE = 128
_SUB = 8
_MAX_TILE_ROWS = 2048  # (2048, 128) f32 tile = 1 MiB; safe on v5e/v6e/v7x


def _round_up(x, m):
    return ((x + m - 1) // m) * m


def _tversky_partial_kernel(x_ref, t_ref, out_ref, *, n, block_rows):
    """One grid step: masked partial sums of one (block_rows, 128) tile.

    Emits an (8, 128) slab with:
      [0, 0] = sum(sigmoid(x) * t)   (partial TP)
      [1, 0] = sum(sigmoid(x))       (partial sum_s)
      [2, 0] = sum(t)                (partial sum_t)
    everything else zero. Independent per step -> grid axis can be parallel.
    """
    i = pl.program_id(0)

    x = x_ref[...].astype(jnp.float32)
    t = t_ref[...].astype(jnp.float32)
    s = jax.nn.sigmoid(x)

    # Validity mask over the flat index: handles both the zero-padded tail of
    # the reshaped array and garbage rows of a ragged last grid block.
    row = jax.lax.broadcasted_iota(jnp.int32, x.shape, 0) + i * block_rows
    lane = jax.lax.broadcasted_iota(jnp.int32, x.shape, 1)
    full_rows = n // _LANE        # static python int
    rem = n % _LANE               # static python int
    valid = (row < full_rows) | ((row == full_rows) & (lane < rem))

    # jnp.where (select) so NaN/Inf garbage in padded regions cannot leak.
    st = jnp.where(valid, s * t, 0.0)
    ss = jnp.where(valid, s, 0.0)
    tt = jnp.where(valid, t, 0.0)

    p_st = jnp.sum(st)
    p_s = jnp.sum(ss)
    p_t = jnp.sum(tt)

    r8 = jax.lax.broadcasted_iota(jnp.int32, (_SUB, _LANE), 0)
    l8 = jax.lax.broadcasted_iota(jnp.int32, (_SUB, _LANE), 1)
    slab = jnp.where(
        (r8 == 0) & (l8 == 0), p_st,
        jnp.where(
            (r8 == 1) & (l8 == 0), p_s,
            jnp.where((r8 == 2) & (l8 == 0), p_t, 0.0),
        ),
    )
    out_ref[...] = slab


@functools.partial(jax.jit, static_argnames=("smooth", "alpha", "beta"))
def tversky_loss(inputs, targets, smooth=1.0, alpha=ALPHA, beta=BETA):
    # Flatten in the ORIGINAL dtypes (cast happens inside the kernel).
    x = jnp.ravel(inputs)
    t = jnp.ravel(targets)
    n = x.shape[0]

    # Reshape to a lane-dense (rows, 128) layout. Only pad (with zeros) when
    # numel is not already a multiple of 8*128; padded elements are masked
    # inside the kernel, so the pad value never matters.
    padded_n = _round_up(n, _SUB * _LANE)
    if padded_n != n:
        x = jnp.pad(x, (0, padded_n - n))
        t = jnp.pad(t, (0, padded_n - n))
    rows = padded_n // _LANE  # multiple of 8
    x2 = x.reshape(rows, _LANE)
    t2 = t.reshape(rows, _LANE)

    block_rows = min(_MAX_TILE_ROWS, rows)  # divisible by 8 by construction
    num_tiles = -(-rows // block_rows)

    in_spec = pl.BlockSpec((block_rows, _LANE), lambda i: (i, 0))
    out_spec = pl.BlockSpec((_SUB, _LANE), lambda i: (i, 0))

    partials = pl.pallas_call(
        functools.partial(_tversky_partial_kernel, n=n, block_rows=block_rows),
        out_shape=jax.ShapeDtypeStruct((num_tiles * _SUB, _LANE), jnp.float32),
        grid_spec=pltpu.PrefetchScalarGridSpec(
            num_scalar_prefetch=0,
            grid=(num_tiles,),
            in_specs=[in_spec, in_spec],
            out_specs=out_spec,
        ),
        compiler_params=pltpu.CompilerParams(
            # Independent per-step partials -> shard across both TCs on v7x.
            dimension_semantics=("parallel",),
        ),
    )(x2, t2)

    p = partials.reshape(num_tiles, _SUB, _LANE)
    tp = jnp.sum(p[:, 0, 0])
    sum_s = jnp.sum(p[:, 1, 0])
    sum_t = jnp.sum(p[:, 2, 0])
    fp = sum_s - tp
    fn = sum_t - tp

    tversky = (tp + smooth) / (tp + alpha * fp + beta * fn + smooth)
    return 1.0 - tversky


def _tversky_ref(inputs, targets, smooth=1.0, alpha=ALPHA, beta=BETA):
    s = jax.nn.sigmoid(jnp.ravel(inputs).astype(jnp.float32))
    t = jnp.ravel(targets).astype(jnp.float32)
    tp = jnp.sum(s * t)
    fp = jnp.sum((1.0 - t) * s)
    fn = jnp.sum(t * (1.0 - s))
    return 1.0 - (tp + smooth) / (tp + alpha * fp + beta * fn + smooth)


if __name__ == "__main__":
    key = jax.random.PRNGKey(0)
    k1, k2 = jax.random.split(key)

    # NCHW logits and binary targets, as the segmentation loss expects.
    inputs = jax.random.normal(k1, (2, 4, 16, 16), dtype=jnp.float32)
    targets = (jax.random.uniform(k2, (2, 4, 16, 16)) > 0.5).astype(jnp.float32)

    loss = tversky_loss(inputs, targets)
    jax.block_until_ready(loss)

    ref = _tversky_ref(inputs, targets)
    assert jnp.allclose(loss, ref, atol=1e-4, rtol=1e-4), (loss, ref)

    print("KERNEL_OK")
</pallas_src>

<mosaic_0001>
module attributes {stable_mosaic.version = 11 : i64} {
  func.func @_tversky_partial_kernel(%arg0: i32, %arg1: memref<16x128xf32, #tpu.memory_space<vmem>>, %arg2: memref<16x128xf32, #tpu.memory_space<vmem>>, %arg3: memref<8x128xf32, #tpu.memory_space<vmem>>) attributes {dimension_semantics = [#tpu.dimension_semantics<parallel>], iteration_bounds = array<i64: 1>, scalar_prefetch = 0 : i64, scratch_operands = 0 : i64, tpu.core_type = #tpu.core_type<tc>, window_params = [{transform_indices = @transform_0, window_bounds = array<i64: 16, 128>}, {transform_indices = @transform_1, window_bounds = array<i64: 16, 128>}, {transform_indices = @transform_2, window_bounds = array<i64: 8, 128>}]} {
    %c0 = arith.constant 0 : index
    %c0_0 = arith.constant 0 : index
    %0 = vector.load %arg1[%c0, %c0_0] : memref<16x128xf32, #tpu.memory_space<vmem>>, vector<16x128xf32>
    %c0_1 = arith.constant 0 : index
    %c0_2 = arith.constant 0 : index
    %1 = vector.load %arg2[%c0_1, %c0_2] : memref<16x128xf32, #tpu.memory_space<vmem>>, vector<16x128xf32>
    %2 = arith.negf %0 : vector<16x128xf32>
    %3 = math.exp %2 : vector<16x128xf32>
    %cst = arith.constant 1.000000e+00 : f32
    %4 = vector.broadcast %cst : f32 to vector<16x128xf32>
    %5 = arith.addf %4, %3 : vector<16x128xf32>
    %6 = arith.divf %4, %5 : vector<16x128xf32>
    %7 = tpu.iota {dimensions = array<i32: 0>} : vector<16x128xi32>
    %c16_i32 = arith.constant 16 : i32
    %8 = arith.muli %arg0, %c16_i32 : i32
    %9 = vector.broadcast %8 : i32 to vector<16x128xi32>
    %10 = arith.addi %7, %9 : vector<16x128xi32>
    %11 = tpu.iota {dimensions = array<i32: 1>} : vector<16x128xi32>
    %c16_i32_3 = arith.constant 16 : i32
    %12 = vector.broadcast %c16_i32_3 : i32 to vector<16x128xi32>
    %13 = arith.cmpi slt, %10, %12 : vector<16x128xi32>
    %c16_i32_4 = arith.constant 16 : i32
    %14 = vector.broadcast %c16_i32_4 : i32 to vector<16x128xi32>
    %15 = arith.cmpi eq, %10, %14 : vector<16x128xi32>
    %c0_i32 = arith.constant 0 : i32
    %16 = vector.broadcast %c0_i32 : i32 to vector<16x128xi32>
    %17 = arith.cmpi slt, %11, %16 : vector<16x128xi32>
    %18 = arith.andi %15, %17 : vector<16x128xi1>
    %19 = arith.ori %13, %18 : vector<16x128xi1>
    %20 = arith.mulf %6, %1 : vector<16x128xf32>
    %cst_5 = arith.constant 0.000000e+00 : f32
    %21 = vector.broadcast %cst_5 : f32 to vector<16x128xf32>
    %22 = arith.select %19, %20, %21 : vector<16x128xi1>, vector<16x128xf32>
    %cst_6 = arith.constant 0.000000e+00 : f32
    %23 = vector.broadcast %cst_6 : f32 to vector<16x128xf32>
    %24 = arith.select %19, %6, %23 : vector<16x128xi1>, vector<16x128xf32>
    %cst_7 = arith.constant 0.000000e+00 : f32
    %25 = vector.broadcast %cst_7 : f32 to vector<16x128xf32>
    %26 = arith.select %19, %1, %25 : vector<16x128xi1>, vector<16x128xf32>
    %27 = vector.shape_cast %22 : vector<16x128xf32> to vector<1x16x128xf32>
    %cst_8 = arith.constant dense<0.000000e+00> : vector<1xf32>
    %28 = vector.multi_reduction <add>, %27, %cst_8 [1, 2] : vector<1x16x128xf32> to vector<1xf32>
    %29 = vector.shape_cast %28 : vector<1xf32> to vector<1x1x1xf32>
    %30 = vector.extract %29[0, 0, 0] : f32 from vector<1x1x1xf32>
    %31 = vector.shape_cast %24 : vector<16x128xf32> to vector<1x16x128xf32>
    %cst_9 = arith.constant dense<0.000000e+00> : vector<1xf32>
    %32 = vector.multi_reduction <add>, %31, %cst_9 [1, 2] : vector<1x16x128xf32> to vector<1xf32>
    %33 = vector.shape_cast %32 : vector<1xf32> to vector<1x1x1xf32>
    %34 = vector.extract %33[0, 0, 0] : f32 from vector<1x1x1xf32>
    %35 = vector.shape_cast %26 : vector<16x128xf32> to vector<1x16x128xf32>
    %cst_10 = arith.constant dense<0.000000e+00> : vector<1xf32>
    %36 = vector.multi_reduction <add>, %35, %cst_10 [1, 2] : vector<1x16x128xf32> to vector<1xf32>
    %37 = vector.shape_cast %36 : vector<1xf32> to vector<1x1x1xf32>
    %38 = vector.extract %37[0, 0, 0] : f32 from vector<1x1x1xf32>
    %39 = tpu.iota {dimensions = array<i32: 0>} : vector<8x128xi32>
    %40 = tpu.iota {dimensions = array<i32: 1>} : vector<8x128xi32>
    %c0_i32_11 = arith.constant 0 : i32
    %41 = vector.broadcast %c0_i32_11 : i32 to vector<8x128xi32>
    %42 = arith.cmpi eq, %39, %41 : vector<8x128xi32>
    %c0_i32_12 = arith.constant 0 : i32
    %43 = vector.broadcast %c0_i32_12 : i32 to vector<8x128xi32>
    %44 = arith.cmpi eq, %40, %43 : vector<8x128xi32>
    %45 = arith.andi %42, %44 : vector<8x128xi1>
    %c1_i32 = arith.constant 1 : i32
    %46 = vector.broadcast %c1_i32 : i32 to vector<8x128xi32>
    %47 = arith.cmpi eq, %39, %46 : vector<8x128xi32>
    %c0_i32_13 = arith.constant 0 : i32
    %48 = vector.broadcast %c0_i32_13 : i32 to vector<8x128xi32>
    %49 = arith.cmpi eq, %40, %48 : vector<8x128xi32>
    %50 = arith.andi %47, %49 : vector<8x128xi1>
    %c2_i32 = arith.constant 2 : i32
    %51 = vector.broadcast %c2_i32 : i32 to vector<8x128xi32>
    %52 = arith.cmpi eq, %39, %51 : vector<8x128xi32>
    %c0_i32_14 = arith.constant 0 : i32
    %53 = vector.broadcast %c0_i32_14 : i32 to vector<8x128xi32>
    %54 = arith.cmpi eq, %40, %53 : vector<8x128xi32>
    %55 = arith.andi %52, %54 : vector<8x128xi1>
    %cst_15 = arith.constant 0.000000e+00 : f32
    %56 = vector.broadcast %38 : f32 to vector<8x128xf32>
    %57 = vector.broadcast %cst_15 : f32 to vector<8x128xf32>
    %58 = arith.select %55, %56, %57 : vector<8x128xi1>, vector<8x128xf32>
    %59 = vector.broadcast %34 : f32 to vector<8x128xf32>
    %60 = arith.select %50, %59, %58 : vector<8x128xi1>, vector<8x128xf32>
    %61 = vector.broadcast %30 : f32 to vector<8x128xf32>
    %62 = arith.select %45, %61, %60 : vector<8x128xi1>, vector<8x128xf32>
    %c0_16 = arith.constant 0 : index
    %c0_17 = arith.constant 0 : index
    %63 = vector.load %arg3[%c0_16, %c0_17] : memref<8x128xf32, #tpu.memory_space<vmem>>, vector<8x128xf32>
    tpu.vector_store %arg3[%c0_16, %c0_17], %62 {strides = array<i32>} : memref<8x128xf32, #tpu.memory_space<vmem>>, vector<8x128xf32>,
    return
  }
  func.func @transform_0(%arg0: i32) -> (i32, i32) {
    %c0_i32 = arith.constant 0 : i32
    %c0_i32_0 = arith.constant 0 : i32
    return %arg0, %c0_i32 : i32, i32
  }
  func.func @transform_1(%arg0: i32) -> (i32, i32) {
    %c0_i32 = arith.constant 0 : i32
    %c0_i32_0 = arith.constant 0 : i32
    return %arg0, %c0_i32 : i32, i32
  }
  func.func @transform_2(%arg0: i32) -> (i32, i32) {
    %c0_i32 = arith.constant 0 : i32
    %c0_i32_0 = arith.constant 0 : i32
    return %arg0, %c0_i32 : i32, i32
  }
}

</mosaic_0001>

<llo_original>
// kernel: tversky_loss.1
$region0: #{tversky_loss.1}
  #allocation0 [shape = 'u32[]', space=smem, size = 0x4, offset = 0x4, fixed_abs, tag = 'smem constant byte address 0x4 - core index']
  #allocation1 [shape = 'u32[144,128]{1,0:T(1,128)}', space=vmem, size = 0x12000, scoped, tag = 'internal scratch']
  %s0 = inlined_call_operand.vmem [shape: f32[16,128], index: 0, kind: input, shape index: {}]
  %s1 = inlined_call_operand.vmem [shape: f32[16,128], index: 1, kind: input, shape index: {}]
  %s2 = inlined_call_operand.vmem [shape: f32[8,128], index: 2, kind: output, shape index: {}]
  %s3 = sld [smem:[#allocation0]]
  $region18: #{tversky_loss.1} parent=0
    _
  %s5 = ssub.s32 1, %s3
  %s6 = scalar_select 0, %s5, %s3
  // Predicated region
  $region2: #{tversky_loss.1} parent=0 // pred_check
    _
  $region3: #{tversky_loss.1} parent=0 // pred_check_branch
    %8 = sbr.rel (0) target = $region5
  $region4: #{tversky_loss.1} parent=0 // pred_region
    _
  $region5: #{tversky_loss.1} parent=0 // pred_fallthru
    _
  // Predicated region
  $region6: #{tversky_loss.1} parent=0 // pred_check
    _
  $region7: #{tversky_loss.1} parent=0 // pred_check_branch
    %10 = sbr.rel (0) target = $region9
  $region8: #{tversky_loss.1} parent=0 // pred_region
    _
  $region9: #{tversky_loss.1} parent=0 // pred_fallthru
    _
  %v11 = vld [vmem:[%s0] sm:$0xff]
  %v12 = vld [vmem:[%s0 + $0x8] sm:$0xff]
  %v13 = vld [vmem:[%s1] sm:$0xff]
  %v14 = vld [vmem:[%s1 + $0x8] sm:$0xff]
  %v15 = vxor.u32 %v11, 2147483648
  %v16 = vxor.u32 %v12, 2147483648
  %v17 = vmul.f32 %v15, 1.442695
  %v18 = vpow.pop %v17
  %v19 = vmul.f32 %v16, 1.442695
  %v20 = vpow.pop %v19
  %v21 = vadd.f32 %v18, 1.0
  %v22 = vadd.f32 %v20, 1.0
  %v23 = vrcp.pop %v21
  %v24 = vmul.f32 1.0, %v23
  %v25 = vrcp.pop %v22
  %v26 = vmul.f32 1.0, %v25
  %v27 = vlaneseq
  %v28 = vshrl.u32 %v27, 7
  %v29 = vadd.s32 %v28, 8
  %s30 = smul.u32 0, 16
  %v31 = vstv %s30
  %v32 = vadd.s32 %v28, %v31
  %v33 = vadd.s32 %v29, %v31
  %v34 = vlaneseq
  %v35 = vand.u32 %v34, 127
  %vm36 = vcmp.lt.s32.totalorder %v32, 16
  %vm37 = vcmp.lt.s32.totalorder %v33, 16
  %vm38 = vcmp.eq.s32.totalorder %v32, 16
  %vm39 = vcmp.eq.s32.totalorder %v33, 16
  %vm40 = vcmp.lt.s32.totalorder %v35, 0
  %vm41 = vmand %vm38, %vm40
  %vm42 = vmand %vm39, %vm40
  %vm43 = vmor %vm36, %vm41
  %vm44 = vmor %vm37, %vm42
  %v45 = vmul.f32 %v24, %v13
  %v46 = vmul.f32 %v26, %v14
  %v47 = vsel %vm43, %v45, 0.0
  %v48 = vsel %vm44, %v46, 0.0
  %v49 = vsel %vm43, %v24, 0.0
  %v50 = vsel %vm44, %v26, 0.0
  %v51 = vsel %vm43, %v13, 0.0
  %v52 = vsel %vm44, %v14, 0.0
  %v53 = vadd.f32 %v47, %v48
  %54 = vadd.xlane.f32.xlu0 %v53
  %v55 = vpop.xlane.xlu0 %54
  %v56 = vrot.slane %v55, 4
  %v57 = vadd.f32 %v55, %v56
  %v58 = vrot.slane %v57, 2
  %v59 = vadd.f32 %v57, %v58
  %v60 = vrot.slane %v59, 1
  %v61 = vadd.f32 %v59, %v60
  %s62 = vtos %v61
  %v63 = vadd.f32 %v49, %v50
  %64 = vadd.xlane.f32.xlu0 %v63
  %v65 = vpop.xlane.xlu0 %64
  %v66 = vrot.slane %v65, 4
  %v67 = vadd.f32 %v65, %v66
  %v68 = vrot.slane %v67, 2
  %v69 = vadd.f32 %v67, %v68
  %v70 = vrot.slane %v69, 1
  %v71 = vadd.f32 %v69, %v70
  %s72 = vtos %v71
  %v73 = vadd.f32 %v51, %v52
  %74 = vadd.xlane.f32.xlu0 %v73
  %v75 = vpop.xlane.xlu0 %74
  %v76 = vrot.slane %v75, 4
  %v77 = vadd.f32 %v75, %v76
  %v78 = vrot.slane %v77, 2
  %v79 = vadd.f32 %v77, %v78
  %v80 = vrot.slane %v79, 1
  %v81 = vadd.f32 %v79, %v80
  %s82 = vtos %v81
  %vm83 = vcmp.eq.s32.totalorder %v28, 0
  %vm84 = vcmp.eq.s32.totalorder %v35, 0
  %vm85 = vmand %vm83, %vm84
  %vm86 = vcmp.eq.s32.totalorder %v28, 1
  %vm87 = vmand %vm86, %vm84
  %vm88 = vcmp.eq.s32.totalorder %v28, 2
  %vm89 = vmand %vm88, %vm84
  %v90 = vstv %s82
  %v91 = vsel %vm89, %v90, 0.0
  %v92 = vstv %s72
  %v93 = vsel %vm87, %v92, %v91
  %v94 = vstv %s62
  %v95 = vsel %vm85, %v94, %v93
  %96 = vst [vmem:[%s2] sm:$0xff] %v95
  // Predicated region
  $region10: #{tversky_loss.1} parent=0 // pred_check
    _
  $region11: #{tversky_loss.1} parent=0 // pred_check_branch
    %98 = sbr.rel (0) target = $region13
  $region12: #{tversky_loss.1} parent=0 // pred_region
    _
  $region13: #{tversky_loss.1} parent=0 // pred_fallthru
    _
  // Predicated region
  $region14: #{tversky_loss.1} parent=0 // pred_check
    _
  $region15: #{tversky_loss.1} parent=0 // pred_check_branch
    %100 = sbr.rel (0) target = $region17
  $region16: #{tversky_loss.1} parent=0 // pred_region
    _
  $region17: #{tversky_loss.1} parent=0 // pred_fallthru
    _

</llo_original>
